<compile_context>
chip_gen: v5e
topology: v5e:2x2
jax: 0.10.0
libtpu: 0.0.40
codegen_flags: <defaults>
</compile_context>

<pallas_src>
import functools

import jax
import jax.numpy as jnp
from jax import lax
from jax.experimental import pallas as pl
from jax.experimental.pallas import tpu as pltpu


def actor_critic_kernel(states_ref, actions_ref,
                        w1_ref, b1_ref, w2_ref, b2_ref,
                        aw3_ref, ab3_ref, cw3_ref, cb3_ref,
                        out_ref, *, h2_split):
    """Transposed layout: batch on the lane axis.

    states_ref : (S, TB)       matmul dtype (bf16 or f32)
    actions_ref: (1, TB)       int32
    w1_ref     : (H1a+H1c, S)  fused layer-1 weight (actor rows | critic rows)
    w2_ref     : (H2a+H2c, H1a+H1c) block-diagonal fused layer-2 weight
    aw3/cw3    : (A, H2a) / (1, H2c)
    biases     : (rows, 1) f32
    out_ref    : (3, TB) f32   rows = [log_prob, value, entropy]
    """
    x = states_ref[...]                              # (S, TB)
    mm_dtype = x.dtype

    # ---- fused layer 1: (64, S) @ (S, TB) -> (64, TB), f32 accumulation ----
    h1 = jnp.dot(w1_ref[...], x, preferred_element_type=jnp.float32) + b1_ref[...]
    h1 = jnp.maximum(h1, 0.0)

    # ---- fused (block-diagonal) layer 2: (64, 64) @ (64, TB) -> (64, TB) ----
    h2 = jnp.dot(w2_ref[...], h1.astype(mm_dtype),
                 preferred_element_type=jnp.float32) + b2_ref[...]
    h2 = jnp.maximum(h2, 0.0).astype(mm_dtype)

    h2_actor = h2[:h2_split, :]                      # (H2a, TB)
    h2_critic = h2[h2_split:, :]                     # (H2c, TB)

    # ---- heads ----
    logits = jnp.dot(aw3_ref[...], h2_actor,
                     preferred_element_type=jnp.float32) + ab3_ref[...]   # (A, TB)
    value = jnp.dot(cw3_ref[...], h2_critic,
                    preferred_element_type=jnp.float32) + cb3_ref[...]    # (1, TB)

    # ---- log-domain softmax over the action (sublane) axis ----
    m = jnp.max(logits, axis=0, keepdims=True)       # (1, TB)
    shifted = logits - m
    denom = jnp.sum(jnp.exp(shifted), axis=0, keepdims=True)
    log_probs = shifted - jnp.log(denom)             # (A, TB), finite
    probs = jnp.exp(log_probs)                       # (A, TB)

    # Categorical.log_prob(actions): gather via one-hot (sublane compare+reduce)
    a = actions_ref[...]                             # (1, TB)
    ids = lax.broadcasted_iota(jnp.int32, log_probs.shape, 0)
    onehot = (ids == a).astype(jnp.float32)
    logp = jnp.sum(onehot * log_probs, axis=0, keepdims=True)   # (1, TB)

    # Categorical.entropy(): -sum p log p  (no 0*(-inf): log_probs is finite)
    ent = -jnp.sum(probs * log_probs, axis=0, keepdims=True)    # (1, TB)

    # Lane-dense packed output slab.
    out_ref[0:1, :] = logp
    out_ref[1:2, :] = value
    out_ref[2:3, :] = ent


def _pick_batch_tile(B):
    """Multi-step grid (pipelining + megacore) when B splits into lane-aligned tiles."""
    for tb in (512, 384, 256, 128):
        if B % tb == 0 and B > tb:
            return tb
    return B   # single full-batch block (block dim == array dim is always legal)


def actor_critic_forward(states, actions, params, *, batch_tile=None, use_bf16=True):
    """states: (B, S) f32, actions: (B,) int. Returns (log_prob (B,), values (B,1), entropy (B,))."""
    B, S = states.shape
    (aw1, ab1, aw2, ab2, aw3, ab3,
     cw1, cb1, cw2, cb2, cw3, cb3) = params
    H1a, H2a, A = aw1.shape[1], aw2.shape[1], aw3.shape[1]
    H1c, H2c = cw1.shape[1], cw2.shape[1]
    n_h1, n_h2 = H1a + H1c, H2a + H2c

    mm_dtype = jnp.bfloat16 if use_bf16 else jnp.float32

    # ---- fused / transposed parameter prep (weights stored (in,out) -> kernel wants (out,in)) ----
    w1f = jnp.concatenate([aw1, cw1], axis=1).T.astype(mm_dtype)       # (n_h1, S)
    b1f = jnp.concatenate([ab1, cb1], axis=1).T.astype(jnp.float32)    # (n_h1, 1)
    w2bd = jnp.zeros((n_h1, n_h2), jnp.float32)
    w2bd = w2bd.at[:H1a, :H2a].set(aw2)
    w2bd = w2bd.at[H1a:, H2a:].set(cw2)
    w2f = w2bd.T.astype(mm_dtype)                                      # (n_h2, n_h1)
    b2f = jnp.concatenate([ab2, cb2], axis=1).T.astype(jnp.float32)    # (n_h2, 1)
    aw3_t = aw3.T.astype(mm_dtype)                                     # (A, H2a)
    ab3_t = ab3.T.astype(jnp.float32)                                  # (A, 1)
    cw3_t = cw3.T.astype(mm_dtype)                                     # (1, H2c)
    cb3_t = cb3.T.astype(jnp.float32)                                  # (1, 1)

    # Transposed, lane-dense activations: batch rides the 128-lane axis.
    states_t = states.T.astype(mm_dtype)                               # (S, B)
    actions_t = actions.reshape(1, B).astype(jnp.int32)                # (1, B)

    TB = batch_tile if batch_tile is not None else _pick_batch_tile(B)
    assert B % TB == 0
    assert TB == B or TB % 128 == 0, "batch tile must be lane-aligned or the full batch"
    grid = (B // TB,)

    # Constant-index weight blocks: Pallas skips the re-DMA when the block index
    # does not change across grid steps, so their double-buffering cost is negligible.
    def full_spec(arr):
        return pl.BlockSpec(arr.shape, lambda i: (0, 0))

    in_specs = [
        pl.BlockSpec((S, TB), lambda i: (0, i)),   # states (lane-tiled batch)
        pl.BlockSpec((1, TB), lambda i: (0, i)),   # actions
        full_spec(w1f), full_spec(b1f), full_spec(w2f), full_spec(b2f),
        full_spec(aw3_t), full_spec(ab3_t), full_spec(cw3_t), full_spec(cb3_t),
    ]
    out_specs = pl.BlockSpec((3, TB), lambda i: (0, i))
    out_shape = jax.ShapeDtypeStruct((3, B), jnp.float32)

    weight_bytes = sum(int(w.size) * w.dtype.itemsize
                       for w in (w1f, b1f, w2f, b2f, aw3_t, ab3_t, cw3_t, cb3_t))
    cost = pl.CostEstimate(
        flops=int(2 * B * (S * n_h1 + n_h1 * n_h2 + H2a * A + H2c)),
        transcendentals=int(B * (2 * A + 1)),
        bytes_accessed=int(states_t.size * states_t.dtype.itemsize
                           + actions_t.size * 4 + 3 * B * 4 + weight_bytes),
    )

    kernel = functools.partial(actor_critic_kernel, h2_split=H2a)
    out = pl.pallas_call(
        kernel,
        grid=grid,
        in_specs=in_specs,
        out_specs=out_specs,
        out_shape=out_shape,
        compiler_params=pltpu.CompilerParams(
            dimension_semantics=("parallel",)),
        cost_estimate=cost,
    )(states_t, actions_t, w1f, b1f, w2f, b2f, aw3_t, ab3_t, cw3_t, cb3_t)

    # match PyTorch shapes: log_prob (B,), values (B,1), entropy (B,)
    return out[0], out[1].reshape(B, 1), out[2]


def init_linear(key, fan_in, fan_out):
    """PyTorch-style Linear init: U(-1/sqrt(fan_in), 1/sqrt(fan_in)); stored (in, out)."""
    kw, kb = jax.random.split(key)
    bound = 1.0 / jnp.sqrt(jnp.float32(fan_in))
    w = jax.random.uniform(kw, (fan_in, fan_out), jnp.float32, -bound, bound)
    b = jax.random.uniform(kb, (1, fan_out), jnp.float32, -bound, bound)
    return w, b


def reference_forward(states, actions, params, *, use_bf16=True):
    """Plain-JAX reference mirroring the PyTorch module (discrete actor) with the
    same matmul-operand dtype policy as the kernel."""
    mm = jnp.bfloat16 if use_bf16 else jnp.float32
    (aw1, ab1, aw2, ab2, aw3, ab3,
     cw1, cb1, cw2, cb2, cw3, cb3) = params

    def mmdot(x, w):
        return jnp.dot(x.astype(mm), w.astype(mm), preferred_element_type=jnp.float32)

    h = jnp.maximum(mmdot(states, aw1) + ab1, 0.0)
    h = jnp.maximum(mmdot(h, aw2) + ab2, 0.0)
    logits = mmdot(h, aw3) + ab3
    m = jnp.max(logits, axis=-1, keepdims=True)
    shifted = logits - m
    logp_all = shifted - jnp.log(jnp.sum(jnp.exp(shifted), axis=-1, keepdims=True))
    probs = jnp.exp(logp_all)
    logp = jnp.take_along_axis(logp_all, actions[:, None], axis=-1)[:, 0]
    ent = -jnp.sum(probs * logp_all, axis=-1)

    hc = jnp.maximum(mmdot(states, cw1) + cb1, 0.0)
    hc = jnp.maximum(mmdot(hc, cw2) + cb2, 0.0)
    values = mmdot(hc, cw3) + cb3
    return logp, values, ent


def _check(states, actions, params, **kw):
    logp, values, ent = actor_critic_forward(states, actions, params, **kw)
    jax.block_until_ready((logp, values, ent))
    logp_r, values_r, ent_r = reference_forward(states, actions, params)
    B = states.shape[0]
    assert logp.shape == (B,) and values.shape == (B, 1) and ent.shape == (B,)
    assert jnp.allclose(logp, logp_r, atol=1e-3, rtol=1e-3)
    assert jnp.allclose(values, values_r, atol=1e-3, rtol=1e-3)
    assert jnp.allclose(ent, ent_r, atol=1e-3, rtol=1e-3)


if __name__ == "__main__":
    # Shapes implied by the module: state dim 16, two hidden layers of 32 in both
    # actor and critic, discrete action space of 4 actions.
    S, H1, H2, A = 16, 32, 32, 4

    key = jax.random.PRNGKey(0)
    keys = jax.random.split(key, 10)

    aw1, ab1 = init_linear(keys[0], S, H1)
    aw2, ab2 = init_linear(keys[1], H1, H2)
    aw3, ab3 = init_linear(keys[2], H2, A)
    cw1, cb1 = init_linear(keys[3], S, H1)
    cw2, cb2 = init_linear(keys[4], H1, H2)
    cw3, cb3 = init_linear(keys[5], H2, 1)
    params = (aw1, ab1, aw2, ab2, aw3, ab3,
              cw1, cb1, cw2, cb2, cw3, cb3)

    # 1) tiny batch: single grid step (block == full batch), quick sanity check
    B_small = 8
    states_s = jax.random.normal(keys[6], (B_small, S), jnp.float32)
    actions_s = jax.random.randint(keys[7], (B_small,), 0, A, jnp.int32)
    _check(states_s, actions_s, params)

    # 2) pipelined path: batch on the 128-lane axis, 4 parallel grid steps
    B_big = 512
    states_b = jax.random.normal(keys[8], (B_big, S), jnp.float32)
    actions_b = jax.random.randint(keys[9], (B_big,), 0, A, jnp.int32)
    _check(states_b, actions_b, params, batch_tile=128)

    # TODO(synk): continuous-actor (Normal) branch and sample_action / action_map
    # lookup are host-side control paths, not implemented in-kernel.
    print("KERNEL_OK")
</pallas_src>

<mosaic_0001>
module attributes {stable_mosaic.version = 11 : i64} {
  func.func @actor_critic_kernel(%arg0: i32, %arg1: memref<16x8xbf16, #tpu.memory_space<vmem>>, %arg2: memref<1x8xi32, #tpu.memory_space<vmem>>, %arg3: memref<64x16xbf16, #tpu.memory_space<vmem>>, %arg4: memref<64x1xf32, #tpu.memory_space<vmem>>, %arg5: memref<64x64xbf16, #tpu.memory_space<vmem>>, %arg6: memref<64x1xf32, #tpu.memory_space<vmem>>, %arg7: memref<4x32xbf16, #tpu.memory_space<vmem>>, %arg8: memref<4x1xf32, #tpu.memory_space<vmem>>, %arg9: memref<1x32xbf16, #tpu.memory_space<vmem>>, %arg10: memref<1x1xf32, #tpu.memory_space<vmem>>, %arg11: memref<3x8xf32, #tpu.memory_space<vmem>>) attributes {dimension_semantics = [#tpu.dimension_semantics<parallel>], iteration_bounds = array<i64: 1>, scalar_prefetch = 0 : i64, scratch_operands = 0 : i64, tpu.core_type = #tpu.core_type<tc>, window_params = [{transform_indices = @transform_0, window_bounds = array<i64: 16, 8>}, {transform_indices = @transform_1, window_bounds = array<i64: 1, 8>}, {pipeline_mode = #tpu.pipeline_mode<synchronous>, transform_indices = @transform_2, window_bounds = array<i64: 64, 16>}, {pipeline_mode = #tpu.pipeline_mode<synchronous>, transform_indices = @transform_3, window_bounds = array<i64: 64, 1>}, {pipeline_mode = #tpu.pipeline_mode<synchronous>, transform_indices = @transform_4, window_bounds = array<i64: 64, 64>}, {pipeline_mode = #tpu.pipeline_mode<synchronous>, transform_indices = @transform_5, window_bounds = array<i64: 64, 1>}, {pipeline_mode = #tpu.pipeline_mode<synchronous>, transform_indices = @transform_6, window_bounds = array<i64: 4, 32>}, {pipeline_mode = #tpu.pipeline_mode<synchronous>, transform_indices = @transform_7, window_bounds = array<i64: 4, 1>}, {pipeline_mode = #tpu.pipeline_mode<synchronous>, transform_indices = @transform_8, window_bounds = array<i64: 1, 32>}, {pipeline_mode = #tpu.pipeline_mode<synchronous>, transform_indices = @transform_9, window_bounds = array<i64: 1, 1>}, {transform_indices = @transform_10, window_bounds = array<i64: 3, 8>}]} {
    %c0 = arith.constant 0 : index
    %c0_0 = arith.constant 0 : index
    %0 = vector.load %arg1[%c0, %c0_0] : memref<16x8xbf16, #tpu.memory_space<vmem>>, vector<16x8xbf16>
    %c0_1 = arith.constant 0 : index
    %c0_2 = arith.constant 0 : index
    %1 = vector.load %arg3[%c0_1, %c0_2] : memref<64x16xbf16, #tpu.memory_space<vmem>>, vector<64x16xbf16>
    %cst = arith.constant dense<0.000000e+00> : vector<64x8xf32>
    %2 = tpu.matmul %1, %0, %cst {dimension_numbers = #tpu.dot_dimension_numbers<[1], [0], [0], [1], [0, 0, 1, 1], [], []>} : vector<64x16xbf16>, vector<16x8xbf16>, vector<64x8xf32> -> vector<64x8xf32>
    %c0_3 = arith.constant 0 : index
    %c0_4 = arith.constant 0 : index
    %3 = vector.load %arg4[%c0_3, %c0_4] : memref<64x1xf32, #tpu.memory_space<vmem>>, vector<64x1xf32>
    %4 = vector.broadcast %3 : vector<64x1xf32> to vector<64x8xf32>
    %5 = arith.addf %2, %4 : vector<64x8xf32>
    %cst_5 = arith.constant 0.000000e+00 : f32
    %6 = vector.broadcast %cst_5 : f32 to vector<64x8xf32>
    %7 = arith.maximumf %5, %6 : vector<64x8xf32>
    %c0_6 = arith.constant 0 : index
    %c0_7 = arith.constant 0 : index
    %8 = vector.load %arg5[%c0_6, %c0_7] : memref<64x64xbf16, #tpu.memory_space<vmem>>, vector<64x64xbf16>
    %9 = arith.truncf %7 : vector<64x8xf32> to vector<64x8xbf16>
    %cst_8 = arith.constant dense<0.000000e+00> : vector<64x8xf32>
    %10 = tpu.matmul %8, %9, %cst_8 {dimension_numbers = #tpu.dot_dimension_numbers<[1], [0], [0], [1], [0, 0, 1, 1], [], []>} : vector<64x64xbf16>, vector<64x8xbf16>, vector<64x8xf32> -> vector<64x8xf32>
    %c0_9 = arith.constant 0 : index
    %c0_10 = arith.constant 0 : index
    %11 = vector.load %arg6[%c0_9, %c0_10] : memref<64x1xf32, #tpu.memory_space<vmem>>, vector<64x1xf32>
    %12 = vector.broadcast %11 : vector<64x1xf32> to vector<64x8xf32>
    %13 = arith.addf %10, %12 : vector<64x8xf32>
    %cst_11 = arith.constant 0.000000e+00 : f32
    %14 = vector.broadcast %cst_11 : f32 to vector<64x8xf32>
    %15 = arith.maximumf %13, %14 : vector<64x8xf32>
    %16 = arith.truncf %15 : vector<64x8xf32> to vector<64x8xbf16>
    %17 = vector.extract_strided_slice %16 {offsets = [0, 0], sizes = [32, 8], strides = [1, 1]} : vector<64x8xbf16> to vector<32x8xbf16>
    %18 = vector.extract_strided_slice %16 {offsets = [32, 0], sizes = [32, 8], strides = [1, 1]} : vector<64x8xbf16> to vector<32x8xbf16>
    %c0_12 = arith.constant 0 : index
    %c0_13 = arith.constant 0 : index
    %19 = vector.load %arg7[%c0_12, %c0_13] : memref<4x32xbf16, #tpu.memory_space<vmem>>, vector<4x32xbf16>
    %cst_14 = arith.constant dense<0.000000e+00> : vector<4x8xf32>
    %20 = tpu.matmul %19, %17, %cst_14 {dimension_numbers = #tpu.dot_dimension_numbers<[1], [0], [0], [1], [0, 0, 1, 1], [], []>} : vector<4x32xbf16>, vector<32x8xbf16>, vector<4x8xf32> -> vector<4x8xf32>
    %c0_15 = arith.constant 0 : index
    %c0_16 = arith.constant 0 : index
    %21 = vector.load %arg8[%c0_15, %c0_16] : memref<4x1xf32, #tpu.memory_space<vmem>>, vector<4x1xf32>
    %22 = vector.broadcast %21 : vector<4x1xf32> to vector<4x8xf32>
    %23 = arith.addf %20, %22 : vector<4x8xf32>
    %c0_17 = arith.constant 0 : index
    %c0_18 = arith.constant 0 : index
    %24 = vector.load %arg9[%c0_17, %c0_18] : memref<1x32xbf16, #tpu.memory_space<vmem>>, vector<1x32xbf16>
    %cst_19 = arith.constant dense<0.000000e+00> : vector<1x8xf32>
    %25 = tpu.matmul %24, %18, %cst_19 {dimension_numbers = #tpu.dot_dimension_numbers<[1], [0], [0], [1], [0, 0, 1, 1], [], []>} : vector<1x32xbf16>, vector<32x8xbf16>, vector<1x8xf32> -> vector<1x8xf32>
    %c0_20 = arith.constant 0 : index
    %c0_21 = arith.constant 0 : index
    %26 = vector.load %arg10[%c0_20, %c0_21] : memref<1x1xf32, #tpu.memory_space<vmem>>, vector<1x1xf32>
    %27 = vector.broadcast %26 : vector<1x1xf32> to vector<1x8xf32>
    %28 = arith.addf %25, %27 : vector<1x8xf32>
    %cst_22 = arith.constant dense<0xFF800000> : vector<8xf32>
    %29 = vector.multi_reduction <maximumf>, %23, %cst_22 [0] : vector<4x8xf32> to vector<8xf32>
    %30 = vector.shape_cast %29 : vector<8xf32> to vector<1x8xf32>
    %31 = vector.broadcast %30 : vector<1x8xf32> to vector<4x8xf32>
    %32 = arith.subf %23, %31 : vector<4x8xf32>
    %33 = math.exp %32 : vector<4x8xf32>
    %cst_23 = arith.constant dense<0.000000e+00> : vector<8xf32>
    %34 = vector.multi_reduction <add>, %33, %cst_23 [0] : vector<4x8xf32> to vector<8xf32>
    %35 = vector.shape_cast %34 : vector<8xf32> to vector<1x8xf32>
    %36 = math.log %35 : vector<1x8xf32>
    %37 = vector.broadcast %36 : vector<1x8xf32> to vector<4x8xf32>
    %38 = arith.subf %32, %37 : vector<4x8xf32>
    %39 = math.exp %38 : vector<4x8xf32>
    %c0_24 = arith.constant 0 : index
    %c0_25 = arith.constant 0 : index
    %40 = vector.load %arg2[%c0_24, %c0_25] : memref<1x8xi32, #tpu.memory_space<vmem>>, vector<1x8xi32>
    %41 = tpu.iota {dimensions = array<i32: 0>} : vector<4x8xi32>
    %42 = vector.broadcast %40 : vector<1x8xi32> to vector<4x8xi32>
    %43 = arith.cmpi eq, %41, %42 : vector<4x8xi32>
    %44 = arith.extui %43 : vector<4x8xi1> to vector<4x8xi32>
    %45 = arith.sitofp %44 : vector<4x8xi32> to vector<4x8xf32>
    %46 = arith.mulf %45, %38 : vector<4x8xf32>
    %cst_26 = arith.constant dense<0.000000e+00> : vector<8xf32>
    %47 = vector.multi_reduction <add>, %46, %cst_26 [0] : vector<4x8xf32> to vector<8xf32>
    %48 = vector.shape_cast %47 : vector<8xf32> to vector<1x8xf32>
    %49 = arith.mulf %39, %38 : vector<4x8xf32>
    %cst_27 = arith.constant dense<0.000000e+00> : vector<8xf32>
    %50 = vector.multi_reduction <add>, %49, %cst_27 [0] : vector<4x8xf32> to vector<8xf32>
    %51 = vector.shape_cast %50 : vector<8xf32> to vector<1x8xf32>
    %cst_28 = arith.constant 0.000000e+00 : f32
    %52 = vector.broadcast %cst_28 : f32 to vector<1x8xf32>
    %53 = arith.subf %52, %51 : vector<1x8xf32>
    %c0_29 = arith.constant 0 : index
    %c0_30 = arith.constant 0 : index
    %54 = vector.load %arg11[%c0_29, %c0_30] : memref<3x8xf32, #tpu.memory_space<vmem>>, vector<1x8xf32>
    tpu.vector_store %arg11[%c0_29, %c0_30], %48 {strides = array<i32>} : memref<3x8xf32, #tpu.memory_space<vmem>>, vector<1x8xf32>,
    %c1 = arith.constant 1 : index
    %c0_31 = arith.constant 0 : index
    %55 = vector.load %arg11[%c1, %c0_31] : memref<3x8xf32, #tpu.memory_space<vmem>>, vector<1x8xf32>
    tpu.vector_store %arg11[%c1, %c0_31], %28 {strides = array<i32>} : memref<3x8xf32, #tpu.memory_space<vmem>>, vector<1x8xf32>,
    %c2 = arith.constant 2 : index
    %c0_32 = arith.constant 0 : index
    %56 = vector.load %arg11[%c2, %c0_32] : memref<3x8xf32, #tpu.memory_space<vmem>>, vector<1x8xf32>
    tpu.vector_store %arg11[%c2, %c0_32], %53 {strides = array<i32>} : memref<3x8xf32, #tpu.memory_space<vmem>>, vector<1x8xf32>,
    return
  }
  func.func @transform_0(%arg0: i32) -> (i32, i32) {
    %c0_i32 = arith.constant 0 : i32
    %c0_i32_0 = arith.constant 0 : i32
    return %c0_i32, %arg0 : i32, i32
  }
  func.func @transform_1(%arg0: i32) -> (i32, i32) {
    %c0_i32 = arith.constant 0 : i32
    %c0_i32_0 = arith.constant 0 : i32
    return %c0_i32, %arg0 : i32, i32
  }
  func.func @transform_2(%arg0: i32) -> (i32, i32) {
    %c0_i32 = arith.constant 0 : i32
    %c0_i32_0 = arith.constant 0 : i32
    %c0_i32_1 = arith.constant 0 : i32
    return %c0_i32, %c0_i32_0 : i32, i32
  }
  func.func @transform_3(%arg0: i32) -> (i32, i32) {
    %c0_i32 = arith.constant 0 : i32
    %c0_i32_0 = arith.constant 0 : i32
    %c0_i32_1 = arith.constant 0 : i32
    return %c0_i32, %c0_i32_0 : i32, i32
  }
  func.func @transform_4(%arg0: i32) -> (i32, i32) {
    %c0_i32 = arith.constant 0 : i32
    %c0_i32_0 = arith.constant 0 : i32
    %c0_i32_1 = arith.constant 0 : i32
    return %c0_i32, %c0_i32_0 : i32, i32
  }
  func.func @transform_5(%arg0: i32) -> (i32, i32) {
    %c0_i32 = arith.constant 0 : i32
    %c0_i32_0 = arith.constant 0 : i32
    %c0_i32_1 = arith.constant 0 : i32
    return %c0_i32, %c0_i32_0 : i32, i32
  }
  func.func @transform_6(%arg0: i32) -> (i32, i32) {
    %c0_i32 = arith.constant 0 : i32
    %c0_i32_0 = arith.constant 0 : i32
    %c0_i32_1 = arith.constant 0 : i32
    return %c0_i32, %c0_i32_0 : i32, i32
  }
  func.func @transform_7(%arg0: i32) -> (i32, i32) {
    %c0_i32 = arith.constant 0 : i32
    %c0_i32_0 = arith.constant 0 : i32
    %c0_i32_1 = arith.constant 0 : i32
    return %c0_i32, %c0_i32_0 : i32, i32
  }
  func.func @transform_8(%arg0: i32) -> (i32, i32) {
    %c0_i32 = arith.constant 0 : i32
    %c0_i32_0 = arith.constant 0 : i32
    %c0_i32_1 = arith.constant 0 : i32
    return %c0_i32, %c0_i32_0 : i32, i32
  }
  func.func @transform_9(%arg0: i32) -> (i32, i32) {
    %c0_i32 = arith.constant 0 : i32
    %c0_i32_0 = arith.constant 0 : i32
    %c0_i32_1 = arith.constant 0 : i32
    return %c0_i32, %c0_i32_0 : i32, i32
  }
  func.func @transform_10(%arg0: i32) -> (i32, i32) {
    %c0_i32 = arith.constant 0 : i32
    %c0_i32_0 = arith.constant 0 : i32
    return %c0_i32, %arg0 : i32, i32
  }
}

</mosaic_0001>

<llo_original>
// kernel: tpu_custom_call.1
$region0: #{tpu_custom_call.1}
  #allocation0 [shape = 'u32[]', space=smem, size = 0x4, offset = 0x4, fixed_abs, tag = 'smem constant byte address 0x4 - core index']
  #allocation1 [shape = 'u32[72,128]{1,0:T(1,128)}', space=vmem, size = 0x9000, scoped, tag = 'internal scratch']
  #allocation2 [shape = 'f32[1,1]{1,0:T(1,128)S(1)}', space=vmem, size = 0x200, scoped, tag = 'scoped memory for tpu_custom_call.1']
  %s0 = inlined_call_operand.vmem [shape: bf16[16,8], index: 0, kind: input, shape index: {}]
  %s1 = inlined_call_operand.vmem [shape: s32[1,8], index: 1, kind: input, shape index: {}]
  %s2 = inlined_call_operand.vmem [shape: bf16[64,16], index: 2, kind: input, shape index: {}]
  %s3 = inlined_call_operand.vmem [shape: f32[64,1], index: 3, kind: input, shape index: {}]
  %s4 = inlined_call_operand.vmem [shape: bf16[64,64], index: 4, kind: input, shape index: {}]
  %s5 = inlined_call_operand.vmem [shape: f32[64,1], index: 5, kind: input, shape index: {}]
  %s6 = inlined_call_operand.vmem [shape: bf16[4,32], index: 6, kind: input, shape index: {}]
  %s7 = inlined_call_operand.vmem [shape: f32[4,1], index: 7, kind: input, shape index: {}]
  %s8 = inlined_call_operand.vmem [shape: bf16[1,32], index: 8, kind: input, shape index: {}]
  %s9 = inlined_call_operand.<no memory space> [shape: f32[1,1], index: 9, kind: input, shape index: {}]
  %s10 = inlined_call_operand.hbm [shape: f32[3,8], index: 10, kind: output, shape index: {}]
  %s11 = sld [smem:[#allocation0]]
  $region50: #{tpu_custom_call.1} parent=0
    _
  %s13 = ssub.s32 1, %s11
  %s14 = scalar_select 0, %s13, %s11
  %v15 = vstv %s9
  %16 = vst [vmem:[#allocation2] sm:$0x1] %v15
  $region1: #{tpu_custom_call.1} parent=0
    #allocation3 [shape = 'u8[2048]{0}', space=vmem, size = 0x800, scoped, tag = 'output window, operand 0, single buffered']
    #allocation4 [shape = 's32[1]{0}', space=sflag, size = 0x4, scoped, tag = 'scoped memory for tpu_custom_call.1']
    %17 = vsyncpa [#allocation4], 0
    // Predicated region
    $region2: #{tpu_custom_call.1} parent=1 // pred_check
      _
    $region3: #{tpu_custom_call.1} parent=1 // pred_check_branch
      %19 = sbr.rel (0) target = $region5
    $region4: #{tpu_custom_call.1} parent=1 // pred_region
      _
    $region5: #{tpu_custom_call.1} parent=1 // pred_fallthru
      _
    // Predicated region
    $region6: #{tpu_custom_call.1} parent=1 // pred_check
      _
    $region7: #{tpu_custom_call.1} parent=1 // pred_check_branch
      %21 = sbr.rel (0) target = $region9
    $region8: #{tpu_custom_call.1} parent=1 // pred_region
      _
    $region9: #{tpu_custom_call.1} parent=1 // pred_fallthru
      _
    // Predicated region
    $region10: #{tpu_custom_call.1} parent=1 // pred_check
      _
    $region11: #{tpu_custom_call.1} parent=1 // pred_check_branch
      %23 = sbr.rel (0) target = $region13
    $region12: #{tpu_custom_call.1} parent=1 // pred_region
      _
    $region13: #{tpu_custom_call.1} parent=1 // pred_fallthru
      _
    // Predicated region
    $region14: #{tpu_custom_call.1} parent=1 // pred_check
      _
    $region15: #{tpu_custom_call.1} parent=1 // pred_check_branch
      %25 = sbr.rel (0) target = $region17
    $region16: #{tpu_custom_call.1} parent=1 // pred_region
      _
    $region17: #{tpu_custom_call.1} parent=1 // pred_fallthru
      _
    // Predicated region
    $region18: #{tpu_custom_call.1} parent=1 // pred_check
      _
    $region19: #{tpu_custom_call.1} parent=1 // pred_check_branch
      %27 = sbr.rel (0) target = $region21
    $region20: #{tpu_custom_call.1} parent=1 // pred_region
      _
    $region21: #{tpu_custom_call.1} parent=1 // pred_fallthru
      _
    // Predicated region
    $region22: #{tpu_custom_call.1} parent=1 // pred_check
      _
    $region23: #{tpu_custom_call.1} parent=1 // pred_check_branch
      %29 = sbr.rel (0) target = $region25
    $region24: #{tpu_custom_call.1} parent=1 // pred_region
      _
    $region25: #{tpu_custom_call.1} parent=1 // pred_fallthru
      _
    // Predicated region
    $region26: #{tpu_custom_call.1} parent=1 // pred_check
      _
    $region27: #{tpu_custom_call.1} parent=1 // pred_check_branch
      %31 = sbr.rel (0) target = $region29
    $region28: #{tpu_custom_call.1} parent=1 // pred_region
      _
    $region29: #{tpu_custom_call.1} parent=1 // pred_fallthru
      _
    // Predicated region
    $region30: #{tpu_custom_call.1} parent=1 // pred_check
      _
    $region31: #{tpu_custom_call.1} parent=1 // pred_check_branch
      %33 = sbr.rel (0) target = $region33
    $region32: #{tpu_custom_call.1} parent=1 // pred_region
      _
    $region33: #{tpu_custom_call.1} parent=1 // pred_fallthru
      _
    // Predicated region
    $region34: #{tpu_custom_call.1} parent=1 // pred_check
      _
    $region35: #{tpu_custom_call.1} parent=1 // pred_check_branch
      %35 = sbr.rel (0) target = $region37
    $region36: #{tpu_custom_call.1} parent=1 // pred_region
      _
    $region37: #{tpu_custom_call.1} parent=1 // pred_fallthru
      _
    // Predicated region
    $region38: #{tpu_custom_call.1} parent=1 // pred_check
      _
    $region39: #{tpu_custom_call.1} parent=1 // pred_check_branch
      %37 = sbr.rel (0) target = $region41
    $region40: #{tpu_custom_call.1} parent=1 // pred_region
      _
    $region41: #{tpu_custom_call.1} parent=1 // pred_fallthru
      _
    %v39 = vld [vmem:[%s0] sm:$0xf]
    %v40 = vld [vmem:[%s0 + $0x4] sm:$0xf]
    %v41 = vld [vmem:[%s2] sm:$0xf]
    %v42 = vld [vmem:[%s2 + $0x4] sm:$0xf]
    %v43 = vld [vmem:[%s2 + $0x8] sm:$0xf]
    %v44 = vld [vmem:[%s2 + $0xc] sm:$0xf]
    %v45 = vld [vmem:[%s2 + $0x10] sm:$0xf]
    %v46 = vld [vmem:[%s2 + $0x14] sm:$0xf]
    %v47 = vld [vmem:[%s2 + $0x18] sm:$0xf]
    %v48 = vld [vmem:[%s2 + $0x1c] sm:$0xf]
    %v49 = vld [vmem:[%s3] sm:$0xff]
    %v50 = vld [vmem:[%s3 + $0x8] sm:$0xff]
    %v51 = vld [vmem:[%s3 + $0x10] sm:$0xff]
    %v52 = vld [vmem:[%s3 + $0x18] sm:$0xff]
    %v53 = vld [vmem:[%s3 + $0x20] sm:$0xff]
    %v54 = vld [vmem:[%s3 + $0x28] sm:$0xff]
    %v55 = vld [vmem:[%s3 + $0x30] sm:$0xff]
    %v56 = vld [vmem:[%s3 + $0x38] sm:$0xff]
    %58 = vset.pattern.permute.xlu0 0
    %59 = vperm.xlu0 %58, %v49
    %v60 = vpop.permute.xlu0 %59
    %63 = vset.pattern.permute.xlu0 0
    %64 = vperm.xlu0 %63, %v50
    %v65 = vpop.permute.xlu0 %64
    %68 = vset.pattern.permute.xlu0 0
    %69 = vperm.xlu0 %68, %v51
    %v70 = vpop.permute.xlu0 %69
    %73 = vset.pattern.permute.xlu0 0
    %74 = vperm.xlu0 %73, %v52
    %v75 = vpop.permute.xlu0 %74
    %78 = vset.pattern.permute.xlu0 0
    %79 = vperm.xlu0 %78, %v53
    %v80 = vpop.permute.xlu0 %79
    %83 = vset.pattern.permute.xlu0 0
    %84 = vperm.xlu0 %83, %v54
    %v85 = vpop.permute.xlu0 %84
    %88 = vset.pattern.permute.xlu0 0
    %89 = vperm.xlu0 %88, %v55
    %v90 = vpop.permute.xlu0 %89
    %93 = vset.pattern.permute.xlu0 0
    %94 = vperm.xlu0 %93, %v56
    %v95 = vpop.permute.xlu0 %94
    %v105 = vunpack.c.l.b16 %v41
    %v106 = vunpack.c.l.b16 %v42
    %v107 = vunpack.c.l.b16 %v43
    %v108 = vunpack.c.l.b16 %v44
    %v109 = vunpack.c.l.b16 %v45
    %v110 = vunpack.c.l.b16 %v46
    %v111 = vunpack.c.l.b16 %v47
    %v112 = vunpack.c.l.b16 %v48
    %v113 = vpack.c.b16 %v106, %v105
    %v114 = vpack.c.b16 %v108, %v107
    %v115 = vpack.c.b16 %v110, %v109
    %v116 = vpack.c.b16 %v112, %v111
    %v119 = vunpack.c.l.b16 %v39
    %v120 = vunpack.c.l.b16 %v40
    %v121 = vpack.c.b16 %v120, %v119
    %vm123 = vcmask 130048
    %v125 = vsel %vm123, %v113, 0
    %v128 = vsel %vm123, %v114, 0
    %v131 = vsel %vm123, %v115, 0
    %v134 = vsel %vm123, %v116, 0
    %136 = vmatpush.bf16.msra.mxu0 0
    %137 = vmatpush.bf16.msra.mxu0 0
    %138 = vmatpush.bf16.msra.mxu0 0
    %139 = vmatpush.bf16.msra.mxu0 0
    %140 = vmatpush.bf16.msra.mxu0 0
    %141 = vmatpush.bf16.msra.mxu0 0
    %142 = vmatpush.bf16.msra.mxu0 0
    %143 = vmatpush.bf16.msra.mxu0 %v121
    %144 = vmatmul.bf16.gmra.mxu0 %v125
    %v145 = vpop.f32.mrf.mxu0
    %v146 = vadd.f32 %v60, %v145
    %v147 = vpop.f32.mrf.mxu0
    %v148 = vadd.f32 %v65, %v147
    %149 = vmatmul.bf16.gmra.mxu0 %v128
    %v150 = vpop.f32.mrf.mxu0
    %v151 = vadd.f32 %v70, %v150
    %v152 = vpop.f32.mrf.mxu0
    %v153 = vadd.f32 %v75, %v152
    %154 = vmatmul.bf16.gmra.mxu0 %v131
    %v155 = vpop.f32.mrf.mxu0
    %v156 = vadd.f32 %v80, %v155
    %v157 = vpop.f32.mrf.mxu0
    %v158 = vadd.f32 %v85, %v157
    %159 = vmatmul.bf16.gmra.mxu0 %v134
    %v160 = vpop.f32.mrf.mxu0
    %v161 = vadd.f32 %v90, %v160
    %v162 = vpop.f32.mrf.mxu0
    %v163 = vadd.f32 %v95, %v162
    %164 = vdwg.mxu0
    %v165 = vmax.f32 %v146, 0.0
    %v166 = vmax.f32 %v148, 0.0
    %v167 = vmax.f32 %v151, 0.0
    %v168 = vmax.f32 %v153, 0.0
    %v169 = vmax.f32 %v156, 0.0
    %v170 = vmax.f32 %v158, 0.0
    %v171 = vmax.f32 %v161, 0.0
    %v172 = vmax.f32 %v163, 0.0
    %v173 = vld [vmem:[%s4] sm:$0xf]
    %v174 = vld [vmem:[%s4 + $0x4] sm:$0xf]
    %v175 = vld [vmem:[%s4 + $0x8] sm:$0xf]
    %v176 = vld [vmem:[%s4 + $0xc] sm:$0xf]
    %v177 = vld [vmem:[%s4 + $0x10] sm:$0xf]
    %v178 = vld [vmem:[%s4 + $0x14] sm:$0xf]
    %v179 = vld [vmem:[%s4 + $0x18] sm:$0xf]
    %v180 = vld [vmem:[%s4 + $0x1c] sm:$0xf]
    %v181 = vpack.c.bf16 %v166, %v165
    %v182 = vpack.c.bf16 %v168, %v167
    %v183 = vpack.c.bf16 %v170, %v169
    %v184 = vpack.c.bf16 %v172, %v171
    %v185 = vld [vmem:[%s5] sm:$0xff]
    %v186 = vld [vmem:[%s5 + $0x8] sm:$0xff]
    %v187 = vld [vmem:[%s5 + $0x10] sm:$0xff]
    %v188 = vld [vmem:[%s5 + $0x18] sm:$0xff]
    %v189 = vld [vmem:[%s5 + $0x20] sm:$0xff]
    %v190 = vld [vmem:[%s5 + $0x28] sm:$0xff]
    %v191 = vld [vmem:[%s5 + $0x30] sm:$0xff]
    %v192 = vld [vmem:[%s5 + $0x38] sm:$0xff]
    %194 = vset.pattern.permute.xlu0 0
    %195 = vperm.xlu0 %194, %v185
    %v196 = vpop.permute.xlu0 %195
    %199 = vset.pattern.permute.xlu0 0
    %200 = vperm.xlu0 %199, %v186
    %v201 = vpop.permute.xlu0 %200
    %204 = vset.pattern.permute.xlu0 0
    %205 = vperm.xlu0 %204, %v187
    %v206 = vpop.permute.xlu0 %205
    %209 = vset.pattern.permute.xlu0 0
    %210 = vperm.xlu0 %209, %v188
    %v211 = vpop.permute.xlu0 %210
    %214 = vset.pattern.permute.xlu0 0
    %215 = vperm.xlu0 %214, %v189
    %v216 = vpop.permute.xlu0 %215
    %219 = vset.pattern.permute.xlu0 0
    %220 = vperm.xlu0 %219, %v190
    %v221 = vpop.permute.xlu0 %220
    %224 = vset.pattern.permute.xlu0 0
    %225 = vperm.xlu0 %224, %v191
    %v226 = vpop.permute.xlu0 %225
    %229 = vset.pattern.permute.xlu0 0
    %230 = vperm.xlu0 %229, %v192
    %v231 = vpop.permute.xlu0 %230
    %v241 = vunpack.c.l.b16 %v173
    %v242 = vunpack.c.l.b16 %v174
    %v243 = vunpack.c.l.b16 %v175
    %v244 = vunpack.c.l.b16 %v176
    %v245 = vunpack.c.l.b16 %v177
    %v246 = vunpack.c.l.b16 %v178
    %v247 = vunpack.c.l.b16 %v179
    %v248 = vunpack.c.l.b16 %v180
    %v249 = vpack.c.b16 %v242, %v241
    %v250 = vpack.c.b16 %v244, %v243
    %v251 = vpack.c.b16 %v246, %v245
    %v252 = vpack.c.b16 %v248, %v247
    %vm253 = vcmask 523264
    %v255 = vsel %vm253, %v249, 0
    %v258 = vsel %vm253, %v250, 0
    %v261 = vsel %vm253, %v251, 0
    %v264 = vsel %vm253, %v252, 0
    %266 = vmatpush.bf16.msra.mxu0 0
    %267 = vmatpush.bf16.msra.mxu0 0
    %268 = vmatpush.bf16.msra.mxu0 0
    %269 = vmatpush.bf16.msra.mxu0 0
    %270 = vmatpush.bf16.msra.mxu0 %v184
    %271 = vmatpush.bf16.msra.mxu0 %v183
    %272 = vmatpush.bf16.msra.mxu0 %v182
    %273 = vmatpush.bf16.msra.mxu0 %v181
    %274 = vmatmul.bf16.gmra.mxu0 %v255
    %v275 = vpop.f32.mrf.mxu0
    %v276 = vadd.f32 %v196, %v275
    %v277 = vpop.f32.mrf.mxu0
    %v278 = vadd.f32 %v201, %v277
    %279 = vmatmul.bf16.gmra.mxu0 %v258
    %v280 = vpop.f32.mrf.mxu0
    %v281 = vadd.f32 %v206, %v280
    %v282 = vpop.f32.mrf.mxu0
    %v283 = vadd.f32 %v211, %v282
    %284 = vmatmul.bf16.gmra.mxu0 %v261
    %v285 = vpop.f32.mrf.mxu0
    %v286 = vadd.f32 %v216, %v285
    %v287 = vpop.f32.mrf.mxu0
    %v288 = vadd.f32 %v221, %v287
    %289 = vmatmul.bf16.gmra.mxu0 %v264
    %v290 = vpop.f32.mrf.mxu0
    %v291 = vadd.f32 %v226, %v290
    %v292 = vpop.f32.mrf.mxu0
    %v293 = vadd.f32 %v231, %v292
    %294 = vdwg.mxu0
    %v295 = vmax.f32 %v276, 0.0
    %v296 = vmax.f32 %v278, 0.0
    %v297 = vmax.f32 %v281, 0.0
    %v298 = vmax.f32 %v283, 0.0
    %v299 = vmax.f32 %v286, 0.0
    %v300 = vmax.f32 %v288, 0.0
    %v301 = vmax.f32 %v291, 0.0
    %v302 = vmax.f32 %v293, 0.0
    %v303 = vpack.c.bf16 %v295, %v295
    %v304 = vpack.c.bf16 %v296, %v296
    %v305 = vpack.c.bf16 %v297, %v297
    %v306 = vpack.c.bf16 %v298, %v298
    %v307 = vpack.c.bf16 %v299, %v299
    %v308 = vpack.c.bf16 %v300, %v300
    %v309 = vpack.c.bf16 %v301, %v301
    %v310 = vpack.c.bf16 %v302, %v302
    %v311 = vld [vmem:[%s6] sm:$0x3]
    %v312 = vld [vmem:[%s7] sm:$0xf]
    %314 = vset.pattern.permute.xlu0 0
    %315 = vperm.xlu0 %314, %v312
    %v316 = vpop.permute.xlu0 %315
    %v322 = vunpack.c.l.b16 %v303
    %v323 = vunpack.c.l.b16 %v304
    %v324 = vunpack.c.l.b16 %v305
    %v325 = vunpack.c.l.b16 %v306
    %v326 = vpack.c.b16 %v323, %v322
    %v327 = vpack.c.b16 %v325, %v324
    %vm330 = vcmask 261120
    %v332 = vsel %vm330, %v311, 0
    %334 = vmatpush.bf16.msra.mxu0 0
    %335 = vmatpush.bf16.msra.mxu0 0
    %336 = vmatpush.bf16.msra.mxu0 0
    %337 = vmatpush.bf16.msra.mxu0 0
    %338 = vmatpush.bf16.msra.mxu0 0
    %339 = vmatpush.bf16.msra.mxu0 0
    %340 = vmatpush.bf16.msra.mxu0 %v327
    %341 = vmatpush.bf16.msra.mxu0 %v326
    %342 = vmatmul.bf16.gmra.mxu0 %v332
    %v343 = vpop.f32.mrf.mxu0
    %v344 = vadd.f32 %v316, %v343
    %v345 = vpop.f32.mrf.mxu0
    %346 = vdwg.mxu0
    %v347 = vld [vmem:[%s8] sm:$0x1]
    %v348 = vld [vmem:[#allocation2] sm:$0x1]
    %350 = vset.pattern.permute.xlu0 0
    %351 = vperm.xlu0 %350, %v348
    %v352 = vpop.permute.xlu0 %351
    %v354 = vperm.slane %v352, 0
    %v359 = vunpack.c.l.b16 %v307
    %v360 = vunpack.c.l.b16 %v308
    %v361 = vunpack.c.l.b16 %v309
    %v362 = vunpack.c.l.b16 %v310
    %v363 = vpack.c.b16 %v360, %v359
    %v364 = vpack.c.b16 %v362, %v361
    %v368 = vsel %vm330, %v347, 0
    %370 = vmatpush.bf16.msra.mxu0 0
    %371 = vmatpush.bf16.msra.mxu0 0
    %372 = vmatpush.bf16.msra.mxu0 0
    %373 = vmatpush.bf16.msra.mxu0 0
    %374 = vmatpush.bf16.msra.mxu0 0
    %375 = vmatpush.bf16.msra.mxu0 0
    %376 = vmatpush.bf16.msra.mxu0 %v364
    %377 = vmatpush.bf16.msra.mxu0 %v363
    %378 = vmatmul.bf16.gmra.mxu0 %v368
    %v379 = vpop.f32.mrf.mxu0
    %v380 = vadd.f32 %v354, %v379
    %v381 = vpop.f32.mrf.mxu0
    %382 = vdwg.mxu0
    %vm383 = vcmask 60416
    %v384 = vsel %vm383, %v344, -inf
    %v385 = vrot.slane %v384, 4
    %v386 = vmax.f32 %v384, %v385
    %v387 = vrot.slane %v386, 2
    %v388 = vmax.f32 %v386, %v387
    %v389 = vrot.slane %v388, 1
    %v390 = vmax.f32 %v388, %v389
    %v391 = vsub.f32 %v344, %v390
    %v392 = vmul.f32 %v391, 1.442695
    %v393 = vpow.pop %v392
    %v394 = vsel %vm383, %v393, 0.0
    %v395 = vrot.slane %v394, 4
    %v396 = vadd.f32 %v394, %v395
    %v397 = vrot.slane %v396, 2
    %v398 = vadd.f32 %v396, %v397
    %v399 = vrot.slane %v398, 1
    %v400 = vadd.f32 %v398, %v399
    %v401 = vlog2.pop %v400
    %v402 = vmul.f32 %v401, 0.6931472
    %v403 = vsub.f32 %v391, %v402
    %v404 = vmul.f32 %v403, 1.442695
    %v405 = vpow.pop %v404
    %v406 = vld [vmem:[%s1] sm:$0x1]
    %v407 = vlaneseq
    %v408 = vshrl.u32 %v407, 7
    %v409 = vperm.slane %v406, 0
    %vm410 = vcmp.eq.s32.totalorder %v408, %v409
    %v411 = vsel %vm410, 1, 0
    %v412 = vcvt.s32.f32 %v411
    %v413 = vmul.f32 %v412, %v403
    %v414 = vsel %vm383, %v413, 0.0
    %v415 = vrot.slane %v414, 4
    %v416 = vadd.f32 %v414, %v415
    %v417 = vrot.slane %v416, 2
    %v418 = vadd.f32 %v416, %v417
    %v419 = vrot.slane %v418, 1
    %v420 = vadd.f32 %v418, %v419
    %v421 = vmul.f32 %v405, %v403
    %v422 = vsel %vm383, %v421, 0.0
    %v423 = vrot.slane %v422, 4
    %v424 = vadd.f32 %v422, %v423
    %v425 = vrot.slane %v424, 2
    %v426 = vadd.f32 %v424, %v425
    %v427 = vrot.slane %v426, 1
    %v428 = vadd.f32 %v426, %v427
    %v429 = vsub.f32 0.0, %v428
    %vm430 = vcmask 57344
    %431 = vst.msk [vmem:[#allocation3] sm:$0x1] %vm430, %v420
    %432 = vst.msk [vmem:[#allocation3 + $0x1] sm:$0x1] %vm430, %v380
    %433 = vst.msk [vmem:[#allocation3 + $0x2] sm:$0x1] %vm430, %v429
    // Predicated region
    $region42: #{tpu_custom_call.1} parent=1 // pred_check
      _
    $region43: #{tpu_custom_call.1} parent=1 // pred_check_branch
      %435 = sbr.rel (0) target = $region45
    $region44: #{tpu_custom_call.1} parent=1 // pred_region
      %437 = vsyncadd [#allocation4], 0
      %s439 = sshll.u32 [#allocation3], 4
      %s440 = int_to_ptr.vmem [resolvable:$true] %s439
      %s441 = sshll.u32 %s10, 4
      %s442 = int_to_ptr.hbm [resolvable:$true] %s441
      %444 = dma.vmem_to_hbm [thread:$0]  %s440, 64, %s442, [#allocation4]
    $region45: #{tpu_custom_call.1} parent=1 // pred_fallthru
      _
    // Predicated region
    $region46: #{tpu_custom_call.1} parent=1 // pred_check
      _
    $region47: #{tpu_custom_call.1} parent=1 // pred_check_branch
      %446 = sbr.rel (0) target = $region49
    $region48: #{tpu_custom_call.1} parent=1 // pred_region
      %448 = dma.done [#allocation4], 64
    $region49: #{tpu_custom_call.1} parent=1 // pred_fallthru
      _
    %449 = vsyncpa [#allocation4], 1

</llo_original>
